<compile_context>
chip_gen: v5e
topology: v5e:2x2
jax: 0.10.0
libtpu: 0.0.40
codegen_flags: <defaults>
</compile_context>

<pallas_src>
import jax
import jax.numpy as jnp
from jax.experimental import pallas as pl
from jax.experimental.pallas import tpu as pltpu


def _cdiv(a, b):
    return (a + b - 1) // b


def _vmem_capacity_bytes():
    try:
        return int(pltpu.get_tpu_info().vmem_capacity_bytes)
    except Exception:
        return 64 * 1024 * 1024  # conservative default (v7x per-core VMEM)


def _pick_tile_h(crop_h, bytes_per_row, live_budget):
    """Largest row-tile height th (multiple of 8, or full crop_h) such that the
    double-buffered operand blocks stay within live_budget bytes."""
    th = live_budget // max(1, 2 * bytes_per_row)  # x2: auto double-buffering
    if th >= crop_h or crop_h < 8:
        return crop_h
    th = max(8, (th // 8) * 8)
    # TODO(synk): for absurdly wide crops (th clamped to 8 yet still over
    # budget) add a W split; not needed for realistic image sizes.
    return th


def _make_masked_kernel(C):
    def kernel(bg_ref, out_ref, tgt_ref, mask_ref, loss_ref):
        n = pl.program_id(0)
        m = mask_ref[0, 0]                     # (th, cw); reused across channels
        for c in range(C):                     # static unroll, C is small (3-4)
            o = out_ref[0, c]                  # (th, cw)
            t = tgt_ref[0, c]
            bgv = bg_ref[n * C + c]            # scalar from 1-D SMEM
            comp = bgv + m * (t - bgv)         # == t*m + (1-m)*bg, fused form
            loss_ref[0, c] = jnp.abs(o - comp)
    return kernel


def _plain_kernel(out_ref, tgt_ref, loss_ref):
    loss_ref[...] = jnp.abs(out_ref[...] - tgt_ref[...])


def rgb_loss(img_out, img_target, bbox=None, mask=None, bg=None, tile_h=None):
    """Pallas implementation of RGBLoss.forward.

    `tile_h` is an optional test-only override of the row-tile height (must be
    a multiple of 8 or equal to the cropped height)."""
    use_mask = (mask is not None) and (bg is not None)
    N, C, H, W = img_out.shape

    # ---- bbox -> static crop window (host ints, same clamping as reference) --
    if bbox is not None:
        xmin, ymin, width, height = [int(v) for v in bbox[0]]
        xmin = max(xmin, 0)
        ymin = max(ymin, 0)
        xmax = min(xmin + width, W)
        ymax = min(ymin + height, H)
    else:
        xmin, ymin, xmax, ymax = 0, 0, W, H
    crop_h = ymax - ymin
    crop_w = xmax - xmin
    if crop_h <= 0 or crop_w <= 0:  # degenerate bbox -> empty result
        return jnp.zeros((N, C, max(crop_h, 0), max(crop_w, 0)), img_out.dtype)

    if (ymin, xmin, ymax, xmax) != (0, 0, H, W):
        # Static crop as an XLA slice (crop-sized read/write only); the kernel
        # then streams exactly crop bytes with BlockSpec double-buffering.
        img_out = img_out[:, :, ymin:ymax, xmin:xmax]
        img_target = img_target[:, :, ymin:ymax, xmin:xmax]
        if use_mask:
            mask = mask[:, :, ymin:ymax, xmin:xmax]

    # ---- per-generation tile sizing & VMEM budget -----------------------------
    itemsize = jnp.dtype(img_out.dtype).itemsize
    planes = 3 * C + (1 if use_mask else 0)    # img_out + img_target + loss (+ mask)
    bytes_per_row = planes * crop_w * itemsize
    vmem_cap = _vmem_capacity_bytes()
    live_budget = min(48 * 1024 * 1024, vmem_cap // 2)
    th = tile_h if tile_h is not None else _pick_tile_h(crop_h, bytes_per_row,
                                                        live_budget)
    th = min(th, crop_h)
    R = _cdiv(crop_h, th)
    needed = 2 * th * bytes_per_row            # double-buffered operand blocks
    vmem_limit = max(needed + (4 << 20), 32 << 20)
    vmem_limit = min(vmem_limit, max(vmem_cap - (8 << 20), 32 << 20))

    grid = (N, R)
    img_spec = pl.BlockSpec((1, C, th, crop_w), lambda n, r: (n, 0, r, 0))
    out_spec = pl.BlockSpec((1, C, th, crop_w), lambda n, r: (n, 0, r, 0))
    out_shape = jax.ShapeDtypeStruct((N, C, crop_h, crop_w), img_out.dtype)
    cparams = pltpu.CompilerParams(
        dimension_semantics=("parallel", "parallel"),
        vmem_limit_bytes=int(vmem_limit))

    if use_mask:
        mask_spec = pl.BlockSpec((1, 1, th, crop_w), lambda n, r: (n, 0, r, 0))
        bg_flat = bg.reshape(-1).astype(img_target.dtype)  # 1-D SMEM, no 2-D pad
        grid_spec = pltpu.PrefetchScalarGridSpec(
            num_scalar_prefetch=0,
            grid=grid,
            in_specs=[pl.BlockSpec(memory_space=pltpu.MemorySpace.SMEM),
                      img_spec, img_spec, mask_spec],
            out_specs=out_spec)
        return pl.pallas_call(
            _make_masked_kernel(C), out_shape=out_shape, grid_spec=grid_spec,
            compiler_params=cparams)(
                bg_flat, img_out, img_target, mask.astype(img_target.dtype))
    else:
        grid_spec = pltpu.PrefetchScalarGridSpec(
            num_scalar_prefetch=0,
            grid=grid,
            in_specs=[img_spec, img_spec],
            out_specs=out_spec)
        return pl.pallas_call(
            _plain_kernel, out_shape=out_shape, grid_spec=grid_spec,
            compiler_params=cparams)(img_out, img_target)


def _reference(img_out, img_target, bbox=None, mask=None, bg=None):
    # pure-JAX reference mirroring the PyTorch forward
    if mask is not None and bg is not None:
        img_target = img_target * mask + (1 - mask) * bg[:, :, None, None]
    if bbox is not None:
        img_height, img_width = img_out.shape[2:]
        xmin, ymin, width, height = [int(v) for v in bbox[0]]
        xmin = max(xmin, 0)
        ymin = max(ymin, 0)
        xmax = min(xmin + width, img_width)
        ymax = min(ymin + height, img_height)
        img_out = img_out[:, :, ymin:ymax, xmin:xmax]
        img_target = img_target[:, :, ymin:ymax, xmin:xmax]
    return jnp.abs(img_out - img_target)


if __name__ == "__main__":
    key = jax.random.PRNGKey(0)
    k1, k2, k3, k4 = jax.random.split(key, 4)

    N, C, H, W = 2, 4, 16, 16
    img_out = jax.random.normal(k1, (N, C, H, W), dtype=jnp.float32)
    img_target = jax.random.normal(k2, (N, C, H, W), dtype=jnp.float32)
    mask = jax.random.uniform(k3, (N, 1, H, W), dtype=jnp.float32)
    bg = jax.random.normal(k4, (N, C), dtype=jnp.float32)
    bbox = [[2, 3, 10, 12]]  # xmin, ymin, width, height (host ints, as in torch)

    # full path: mask + bg compositing with the bbox crop
    loss = jax.block_until_ready(
        rgb_loss(img_out, img_target, bbox=bbox, mask=mask, bg=bg))
    ref = _reference(img_out, img_target, bbox=bbox, mask=mask, bg=bg)
    assert loss.shape == ref.shape, (loss.shape, ref.shape)
    assert float(jnp.max(jnp.abs(loss - ref))) < 1e-5

    # same path but force multi-row-tile iteration with a partial last tile
    loss_t = jax.block_until_ready(
        rgb_loss(img_out, img_target, bbox=bbox, mask=mask, bg=bg, tile_h=8))
    assert loss_t.shape == ref.shape
    assert float(jnp.max(jnp.abs(loss_t - ref))) < 1e-5

    # masked, no bbox
    loss_m = jax.block_until_ready(rgb_loss(img_out, img_target, mask=mask, bg=bg))
    ref_m = _reference(img_out, img_target, mask=mask, bg=bg)
    assert float(jnp.max(jnp.abs(loss_m - ref_m))) < 1e-5

    # plain abs-diff, no mask / no bbox
    loss_p = jax.block_until_ready(rgb_loss(img_out, img_target))
    ref_p = _reference(img_out, img_target)
    assert float(jnp.max(jnp.abs(loss_p - ref_p))) < 1e-5

    print("KERNEL_OK")
</pallas_src>

<mosaic_0001>
module attributes {stable_mosaic.version = 11 : i64} {
  func.func @kernel(%arg0: i32, %arg1: i32, %arg2: memref<8xf32, #tpu.memory_space<smem>>, %arg3: memref<1x4x12x10xf32, #tpu.memory_space<vmem>>, %arg4: memref<1x4x12x10xf32, #tpu.memory_space<vmem>>, %arg5: memref<1x1x12x10xf32, #tpu.memory_space<vmem>>, %arg6: memref<1x4x12x10xf32, #tpu.memory_space<vmem>>) attributes {dimension_semantics = [#tpu.dimension_semantics<parallel>, #tpu.dimension_semantics<parallel>], iteration_bounds = array<i64: 2, 1>, scalar_prefetch = 0 : i64, scratch_operands = 0 : i64, tpu.core_type = #tpu.core_type<tc>, window_params = [{transform_indices = @transform_0, window_bounds = array<i64: 8>}, {transform_indices = @transform_1, window_bounds = array<i64: 1, 4, 12, 10>}, {transform_indices = @transform_2, window_bounds = array<i64: 1, 4, 12, 10>}, {transform_indices = @transform_3, window_bounds = array<i64: 1, 1, 12, 10>}, {transform_indices = @transform_4, window_bounds = array<i64: 1, 4, 12, 10>}]} {
    %c0 = arith.constant 0 : index
    %c0_0 = arith.constant 0 : index
    %c0_1 = arith.constant 0 : index
    %c0_2 = arith.constant 0 : index
    %0 = vector.load %arg5[%c0, %c0_0, %c0_1, %c0_2] : memref<1x1x12x10xf32, #tpu.memory_space<vmem>>, vector<1x1x12x10xf32>
    %1 = vector.shape_cast %0 : vector<1x1x12x10xf32> to vector<12x10xf32>
    %c0_3 = arith.constant 0 : index
    %c0_4 = arith.constant 0 : index
    %c0_5 = arith.constant 0 : index
    %c0_6 = arith.constant 0 : index
    %2 = vector.load %arg3[%c0_3, %c0_4, %c0_5, %c0_6] : memref<1x4x12x10xf32, #tpu.memory_space<vmem>>, vector<1x1x12x10xf32>
    %3 = vector.shape_cast %2 : vector<1x1x12x10xf32> to vector<12x10xf32>
    %c0_7 = arith.constant 0 : index
    %c0_8 = arith.constant 0 : index
    %c0_9 = arith.constant 0 : index
    %c0_10 = arith.constant 0 : index
    %4 = vector.load %arg4[%c0_7, %c0_8, %c0_9, %c0_10] : memref<1x4x12x10xf32, #tpu.memory_space<vmem>>, vector<1x1x12x10xf32>
    %5 = vector.shape_cast %4 : vector<1x1x12x10xf32> to vector<12x10xf32>
    %c4_i32 = arith.constant 4 : i32
    %6 = arith.muli %arg0, %c4_i32 : i32
    %c0_i32 = arith.constant 0 : i32
    %7 = arith.addi %6, %c0_i32 : i32
    %8 = arith.index_cast %7 : i32 to index
    %9 = memref.load %arg2[%8] : memref<8xf32, #tpu.memory_space<smem>>
    %10 = vector.broadcast %9 : f32 to vector<12x10xf32>
    %11 = arith.subf %5, %10 : vector<12x10xf32>
    %12 = arith.mulf %1, %11 : vector<12x10xf32>
    %13 = vector.broadcast %9 : f32 to vector<12x10xf32>
    %14 = arith.addf %13, %12 : vector<12x10xf32>
    %15 = arith.subf %3, %14 : vector<12x10xf32>
    %16 = math.absf %15 : vector<12x10xf32>
    %c0_11 = arith.constant 0 : index
    %c0_12 = arith.constant 0 : index
    %c0_13 = arith.constant 0 : index
    %c0_14 = arith.constant 0 : index
    %17 = vector.load %arg6[%c0_11, %c0_12, %c0_13, %c0_14] : memref<1x4x12x10xf32, #tpu.memory_space<vmem>>, vector<1x1x12x10xf32>
    %18 = vector.shape_cast %17 : vector<1x1x12x10xf32> to vector<12x10xf32>
    %19 = vector.shape_cast %16 : vector<12x10xf32> to vector<1x1x12x10xf32>
    tpu.vector_store %arg6[%c0_11, %c0_12, %c0_13, %c0_14], %19 {strides = array<i32>} : memref<1x4x12x10xf32, #tpu.memory_space<vmem>>, vector<1x1x12x10xf32>,
    %c0_15 = arith.constant 0 : index
    %c1 = arith.constant 1 : index
    %c0_16 = arith.constant 0 : index
    %c0_17 = arith.constant 0 : index
    %20 = vector.load %arg3[%c0_15, %c1, %c0_16, %c0_17] : memref<1x4x12x10xf32, #tpu.memory_space<vmem>>, vector<1x1x12x10xf32>
    %21 = vector.shape_cast %20 : vector<1x1x12x10xf32> to vector<12x10xf32>
    %c0_18 = arith.constant 0 : index
    %c1_19 = arith.constant 1 : index
    %c0_20 = arith.constant 0 : index
    %c0_21 = arith.constant 0 : index
    %22 = vector.load %arg4[%c0_18, %c1_19, %c0_20, %c0_21] : memref<1x4x12x10xf32, #tpu.memory_space<vmem>>, vector<1x1x12x10xf32>
    %23 = vector.shape_cast %22 : vector<1x1x12x10xf32> to vector<12x10xf32>
    %c4_i32_22 = arith.constant 4 : i32
    %24 = arith.muli %arg0, %c4_i32_22 : i32
    %c1_i32 = arith.constant 1 : i32
    %25 = arith.addi %24, %c1_i32 : i32
    %26 = arith.index_cast %25 : i32 to index
    %27 = memref.load %arg2[%26] : memref<8xf32, #tpu.memory_space<smem>>
    %28 = vector.broadcast %27 : f32 to vector<12x10xf32>
    %29 = arith.subf %23, %28 : vector<12x10xf32>
    %30 = arith.mulf %1, %29 : vector<12x10xf32>
    %31 = vector.broadcast %27 : f32 to vector<12x10xf32>
    %32 = arith.addf %31, %30 : vector<12x10xf32>
    %33 = arith.subf %21, %32 : vector<12x10xf32>
    %34 = math.absf %33 : vector<12x10xf32>
    %c0_23 = arith.constant 0 : index
    %c1_24 = arith.constant 1 : index
    %c0_25 = arith.constant 0 : index
    %c0_26 = arith.constant 0 : index
    %35 = vector.load %arg6[%c0_23, %c1_24, %c0_25, %c0_26] : memref<1x4x12x10xf32, #tpu.memory_space<vmem>>, vector<1x1x12x10xf32>
    %36 = vector.shape_cast %35 : vector<1x1x12x10xf32> to vector<12x10xf32>
    %37 = vector.shape_cast %34 : vector<12x10xf32> to vector<1x1x12x10xf32>
    tpu.vector_store %arg6[%c0_23, %c1_24, %c0_25, %c0_26], %37 {strides = array<i32>} : memref<1x4x12x10xf32, #tpu.memory_space<vmem>>, vector<1x1x12x10xf32>,
    %c0_27 = arith.constant 0 : index
    %c2 = arith.constant 2 : index
    %c0_28 = arith.constant 0 : index
    %c0_29 = arith.constant 0 : index
    %38 = vector.load %arg3[%c0_27, %c2, %c0_28, %c0_29] : memref<1x4x12x10xf32, #tpu.memory_space<vmem>>, vector<1x1x12x10xf32>
    %39 = vector.shape_cast %38 : vector<1x1x12x10xf32> to vector<12x10xf32>
    %c0_30 = arith.constant 0 : index
    %c2_31 = arith.constant 2 : index
    %c0_32 = arith.constant 0 : index
    %c0_33 = arith.constant 0 : index
    %40 = vector.load %arg4[%c0_30, %c2_31, %c0_32, %c0_33] : memref<1x4x12x10xf32, #tpu.memory_space<vmem>>, vector<1x1x12x10xf32>
    %41 = vector.shape_cast %40 : vector<1x1x12x10xf32> to vector<12x10xf32>
    %c4_i32_34 = arith.constant 4 : i32
    %42 = arith.muli %arg0, %c4_i32_34 : i32
    %c2_i32 = arith.constant 2 : i32
    %43 = arith.addi %42, %c2_i32 : i32
    %44 = arith.index_cast %43 : i32 to index
    %45 = memref.load %arg2[%44] : memref<8xf32, #tpu.memory_space<smem>>
    %46 = vector.broadcast %45 : f32 to vector<12x10xf32>
    %47 = arith.subf %41, %46 : vector<12x10xf32>
    %48 = arith.mulf %1, %47 : vector<12x10xf32>
    %49 = vector.broadcast %45 : f32 to vector<12x10xf32>
    %50 = arith.addf %49, %48 : vector<12x10xf32>
    %51 = arith.subf %39, %50 : vector<12x10xf32>
    %52 = math.absf %51 : vector<12x10xf32>
    %c0_35 = arith.constant 0 : index
    %c2_36 = arith.constant 2 : index
    %c0_37 = arith.constant 0 : index
    %c0_38 = arith.constant 0 : index
    %53 = vector.load %arg6[%c0_35, %c2_36, %c0_37, %c0_38] : memref<1x4x12x10xf32, #tpu.memory_space<vmem>>, vector<1x1x12x10xf32>
    %54 = vector.shape_cast %53 : vector<1x1x12x10xf32> to vector<12x10xf32>
    %55 = vector.shape_cast %52 : vector<12x10xf32> to vector<1x1x12x10xf32>
    tpu.vector_store %arg6[%c0_35, %c2_36, %c0_37, %c0_38], %55 {strides = array<i32>} : memref<1x4x12x10xf32, #tpu.memory_space<vmem>>, vector<1x1x12x10xf32>,
    %c0_39 = arith.constant 0 : index
    %c3 = arith.constant 3 : index
    %c0_40 = arith.constant 0 : index
    %c0_41 = arith.constant 0 : index
    %56 = vector.load %arg3[%c0_39, %c3, %c0_40, %c0_41] : memref<1x4x12x10xf32, #tpu.memory_space<vmem>>, vector<1x1x12x10xf32>
    %57 = vector.shape_cast %56 : vector<1x1x12x10xf32> to vector<12x10xf32>
    %c0_42 = arith.constant 0 : index
    %c3_43 = arith.constant 3 : index
    %c0_44 = arith.constant 0 : index
    %c0_45 = arith.constant 0 : index
    %58 = vector.load %arg4[%c0_42, %c3_43, %c0_44, %c0_45] : memref<1x4x12x10xf32, #tpu.memory_space<vmem>>, vector<1x1x12x10xf32>
    %59 = vector.shape_cast %58 : vector<1x1x12x10xf32> to vector<12x10xf32>
    %c4_i32_46 = arith.constant 4 : i32
    %60 = arith.muli %arg0, %c4_i32_46 : i32
    %c3_i32 = arith.constant 3 : i32
    %61 = arith.addi %60, %c3_i32 : i32
    %62 = arith.index_cast %61 : i32 to index
    %63 = memref.load %arg2[%62] : memref<8xf32, #tpu.memory_space<smem>>
    %64 = vector.broadcast %63 : f32 to vector<12x10xf32>
    %65 = arith.subf %59, %64 : vector<12x10xf32>
    %66 = arith.mulf %1, %65 : vector<12x10xf32>
    %67 = vector.broadcast %63 : f32 to vector<12x10xf32>
    %68 = arith.addf %67, %66 : vector<12x10xf32>
    %69 = arith.subf %57, %68 : vector<12x10xf32>
    %70 = math.absf %69 : vector<12x10xf32>
    %c0_47 = arith.constant 0 : index
    %c3_48 = arith.constant 3 : index
    %c0_49 = arith.constant 0 : index
    %c0_50 = arith.constant 0 : index
    %71 = vector.load %arg6[%c0_47, %c3_48, %c0_49, %c0_50] : memref<1x4x12x10xf32, #tpu.memory_space<vmem>>, vector<1x1x12x10xf32>
    %72 = vector.shape_cast %71 : vector<1x1x12x10xf32> to vector<12x10xf32>
    %73 = vector.shape_cast %70 : vector<12x10xf32> to vector<1x1x12x10xf32>
    tpu.vector_store %arg6[%c0_47, %c3_48, %c0_49, %c0_50], %73 {strides = array<i32>} : memref<1x4x12x10xf32, #tpu.memory_space<vmem>>, vector<1x1x12x10xf32>,
    return
  }
  func.func @transform_0(%arg0: i32, %arg1: i32) -> i32 {
    %c0_i32 = arith.constant 0 : i32
    %c0_i32_0 = arith.constant 0 : i32
    return %c0_i32 : i32
  }
  func.func @transform_1(%arg0: i32, %arg1: i32) -> (i32, i32, i32, i32) {
    %c0_i32 = arith.constant 0 : i32
    %c0_i32_0 = arith.constant 0 : i32
    %c0_i32_1 = arith.constant 0 : i32
    return %arg0, %c0_i32, %arg1, %c0_i32_0 : i32, i32, i32, i32
  }
  func.func @transform_2(%arg0: i32, %arg1: i32) -> (i32, i32, i32, i32) {
    %c0_i32 = arith.constant 0 : i32
    %c0_i32_0 = arith.constant 0 : i32
    %c0_i32_1 = arith.constant 0 : i32
    return %arg0, %c0_i32, %arg1, %c0_i32_0 : i32, i32, i32, i32
  }
  func.func @transform_3(%arg0: i32, %arg1: i32) -> (i32, i32, i32, i32) {
    %c0_i32 = arith.constant 0 : i32
    %c0_i32_0 = arith.constant 0 : i32
    %c0_i32_1 = arith.constant 0 : i32
    return %arg0, %c0_i32, %arg1, %c0_i32_0 : i32, i32, i32, i32
  }
  func.func @transform_4(%arg0: i32, %arg1: i32) -> (i32, i32, i32, i32) {
    %c0_i32 = arith.constant 0 : i32
    %c0_i32_0 = arith.constant 0 : i32
    %c0_i32_1 = arith.constant 0 : i32
    return %arg0, %c0_i32, %arg1, %c0_i32_0 : i32, i32, i32, i32
  }
}

</mosaic_0001>

<llo_original>
// kernel: tpu_custom_call.1
$region0: #{tpu_custom_call.1}
  #allocation0 [shape = 'u32[]', space=smem, size = 0x4, offset = 0x4, fixed_abs, tag = 'smem constant byte address 0x4 - core index']
  #allocation1 [shape = 'u32[72,128]{1,0:T(1,128)}', space=vmem, size = 0x9000, scoped, tag = 'internal scratch']
  %s0 = inlined_call_operand.vmem [shape: f32[8], index: 0, kind: input, shape index: {}]
  %s1 = inlined_call_operand.vmem [shape: f32[2,4,12,10], index: 1, kind: input, shape index: {}]
  %s2 = inlined_call_operand.vmem [shape: f32[2,4,12,10], index: 2, kind: input, shape index: {}]
  %s3 = inlined_call_operand.vmem [shape: f32[2,1,12,10], index: 3, kind: input, shape index: {}]
  %s4 = inlined_call_operand.vmem [shape: f32[2,4,12,10], index: 4, kind: output, shape index: {}]
  %s5 = sld [smem:[#allocation0]]
  $region53: #{tpu_custom_call.1} parent=0
    _
  %s7 = ssub.s32 1, %s5
  %s8 = scalar_select 0, %s7, %s5
  $region1: #{tpu_custom_call.1} parent=0
    #allocation2 [shape = 'u8[512]{0}', space=smem, size = 0x200, scoped, tag = 'input window, operand 0, single buffered']
    #allocation3 [shape = 's32[2]{0}', space=sflag, size = 0x8, scoped, tag = 'scoped memory for tpu_custom_call.1']
    %9 = vsyncpa [#allocation3], 0
    loop: start=0, step=1, limit=4
    $region2: #{tpu_custom_call.1} parent=1 // loop_pre_header
      _
    $region3: #{tpu_custom_call.1} parent=1 // loop_header
      %s11 = sphi 0, %s15
      %p12 = scmp.ge.s32.totalorder %s11, 4
      %s18 = sphi 0, %s30
      %s19 = sphi 0, %s26
      %s20 = sphi 0, %s18
      %s21 = sphi 0, %s19
      %s22 = sphi 0, %s20
      %s23 = sphi 0, %s21
      %s31 = sphi 0, %s31
      %s33 = sphi 0, %s31
      %s34 = sphi 0, %s33
      %s48 = sphi 0, %s34
      %s56 = sphi 0, %s58
      %s59 = sphi 0, %s56
      %s60 = sphi 0, %s59
      %s76 = sphi 0, %s60
      %s84 = sphi 0, %s86
      %s87 = sphi 0, %s84
      %s88 = sphi 0, %s87
      %s104 = sphi 0, %s88
      %s112 = sphi 0, %s114
      %s115 = sphi 0, %s112
      %s116 = sphi 0, %s115
      %s132 = sphi 0, %s116
      %s140 = sphi 0, %s142
      %s143 = sphi 0, %s140
      %s144 = sphi 0, %s143
      %s160 = sphi 0, %s144
    $region4: #{tpu_custom_call.1} parent=1 // loop_header_branch
      %14 = sbr.rel (%p12) target = $region8
    $region5: #{tpu_custom_call.1} parent=1 // loop_body
      %s16 = ssub.s32 %s11, 1
      %s17 = ssub.s32 %s11, 2
      %s24 = sadd.s32 1, %s19
      %p25 = scmp.ge.s32.totalorder %s24, 1
      %s26 = scalar_select %p25, 0, %s24
      %s27 = sadd.s32 1, %s18
      %s28 = scalar_select %p25, %s27, %s18
      %p29 = scmp.ge.s32.totalorder %s28, 2
      %s30 = scalar_select %p29, 0, %s28
      %s32 = sadd.s32 %s31, 1
      %p35 = scmp.eq.s32.totalorder %s11, 1
      %p36 = scmp.ne.s32.totalorder %s31, %s33
      %p37 = scmp.eq.s32.totalorder %s11, 0
      %p38 = por %p36, %p37
      %p39 = scmp.ne.s32.totalorder %s31, %s33
      %p40 = scmp.eq.s32.totalorder %s16, 1
      %p41 = por %p39, %p40
      %p42 = scmp.ne.s32.totalorder %s33, %s34
      %p43 = scmp.eq.s32.totalorder %s16, 0
      %p44 = por %p42, %p43
      %p45 = scmp.ne.s32.totalorder %s33, %s34
      %p46 = scmp.eq.s32.totalorder %s17, 1
      %p47 = por %p45, %p46
      %p49 = scmp.ne.s32.totalorder %s34, %s48
      %p50 = scmp.eq.s32.totalorder %s17, 0
      %p51 = por %p49, %p50
      %s52 = ssub.s32 %s18, %s30
      %s53 = ssub.s32 %s19, %s26
      %s54 = sor.u32 %s52, %s53
      %p55 = scmp.eq.s32.totalorder %s54, 0
      %s57 = sadd.s32 %s56, 1
      %s58 = scalar_select %p55, %s56, %s57
      %p61 = pneg %p55
      %p62 = scmp.eq.s32.totalorder %s11, 1
      %p63 = por %p61, %p62
      %p64 = scmp.ne.s32.totalorder %s56, %s59
      %p65 = scmp.eq.s32.totalorder %s11, 0
      %p66 = por %p64, %p65
      %p67 = scmp.ne.s32.totalorder %s56, %s59
      %p68 = scmp.eq.s32.totalorder %s16, 1
      %p69 = por %p67, %p68
      %p70 = scmp.ne.s32.totalorder %s59, %s60
      %p71 = scmp.eq.s32.totalorder %s16, 0
      %p72 = por %p70, %p71
      %p73 = scmp.ne.s32.totalorder %s59, %s60
      %p74 = scmp.eq.s32.totalorder %s17, 1
      %p75 = por %p73, %p74
      %p77 = scmp.ne.s32.totalorder %s60, %s76
      %p78 = scmp.eq.s32.totalorder %s17, 0
      %p79 = por %p77, %p78
      %s80 = ssub.s32 %s18, %s30
      %s81 = ssub.s32 %s19, %s26
      %s82 = sor.u32 %s80, %s81
      %p83 = scmp.eq.s32.totalorder %s82, 0
      %s85 = sadd.s32 %s84, 1
      %s86 = scalar_select %p83, %s84, %s85
      %p89 = pneg %p83
      %p90 = scmp.eq.s32.totalorder %s11, 1
      %p91 = por %p89, %p90
      %p92 = scmp.ne.s32.totalorder %s84, %s87
      %p93 = scmp.eq.s32.totalorder %s11, 0
      %p94 = por %p92, %p93
      %p95 = scmp.ne.s32.totalorder %s84, %s87
      %p96 = scmp.eq.s32.totalorder %s16, 1
      %p97 = por %p95, %p96
      %p98 = scmp.ne.s32.totalorder %s87, %s88
      %p99 = scmp.eq.s32.totalorder %s16, 0
      %p100 = por %p98, %p99
      %p101 = scmp.ne.s32.totalorder %s87, %s88
      %p102 = scmp.eq.s32.totalorder %s17, 1
      %p103 = por %p101, %p102
      %p105 = scmp.ne.s32.totalorder %s88, %s104
      %p106 = scmp.eq.s32.totalorder %s17, 0
      %p107 = por %p105, %p106
      %s108 = ssub.s32 %s18, %s30
      %s109 = ssub.s32 %s19, %s26
      %s110 = sor.u32 %s108, %s109
      %p111 = scmp.eq.s32.totalorder %s110, 0
      %s113 = sadd.s32 %s112, 1
      %s114 = scalar_select %p111, %s112, %s113
      %p117 = pneg %p111
      %p118 = scmp.eq.s32.totalorder %s11, 1
      %p119 = por %p117, %p118
      %p120 = scmp.ne.s32.totalorder %s112, %s115
      %p121 = scmp.eq.s32.totalorder %s11, 0
      %p122 = por %p120, %p121
      %p123 = scmp.ne.s32.totalorder %s112, %s115
      %p124 = scmp.eq.s32.totalorder %s16, 1
      %p125 = por %p123, %p124
      %p126 = scmp.ne.s32.totalorder %s115, %s116
      %p127 = scmp.eq.s32.totalorder %s16, 0
      %p128 = por %p126, %p127
      %p129 = scmp.ne.s32.totalorder %s115, %s116
      %p130 = scmp.eq.s32.totalorder %s17, 1
      %p131 = por %p129, %p130
      %p133 = scmp.ne.s32.totalorder %s116, %s132
      %p134 = scmp.eq.s32.totalorder %s17, 0
      %p135 = por %p133, %p134
      %s136 = ssub.s32 %s18, %s30
      %s137 = ssub.s32 %s19, %s26
      %s138 = sor.u32 %s136, %s137
      %p139 = scmp.eq.s32.totalorder %s138, 0
      %s141 = sadd.s32 %s140, 1
      %s142 = scalar_select %p139, %s140, %s141
      %p145 = pneg %p139
      %p146 = scmp.eq.s32.totalorder %s11, 1
      %p147 = por %p145, %p146
      %p148 = scmp.ne.s32.totalorder %s140, %s143
      %p149 = scmp.eq.s32.totalorder %s11, 0
      %p150 = por %p148, %p149
      %p151 = scmp.ne.s32.totalorder %s140, %s143
      %p152 = scmp.eq.s32.totalorder %s16, 1
      %p153 = por %p151, %p152
      %p154 = scmp.ne.s32.totalorder %s143, %s144
      %p155 = scmp.eq.s32.totalorder %s16, 0
      %p156 = por %p154, %p155
      %p157 = scmp.ne.s32.totalorder %s143, %s144
      %p158 = scmp.eq.s32.totalorder %s17, 1
      %p159 = por %p157, %p158
      %p161 = scmp.ne.s32.totalorder %s144, %s160
      %p162 = scmp.eq.s32.totalorder %s17, 0
      %p163 = por %p161, %p162
      %p164 = scmp.le.s32.totalorder 1, %s11
      %p165 = scmp.lt.s32.totalorder %s11, 3
      %p166 = pnand %p164, %p165
      %p167 = pneg %p166
      // Predicated region
      $region9: #{tpu_custom_call.1} parent=5 // pred_check
        _
      $region10: #{tpu_custom_call.1} parent=5 // pred_check_branch
        %169 = sbr.rel (%p166) target = $region12
      $region11: #{tpu_custom_call.1} parent=5 // pred_region
        %s170 = ssub.s32 %s11, 1
        // Predicated region
        $region13: #{tpu_custom_call.1} parent=11 // pred_check
          %p171 = pneg %p44
        $region14: #{tpu_custom_call.1} parent=11 // pred_check_branch
          %173 = sbr.rel (%p171) target = $region16
        $region15: #{tpu_custom_call.1} parent=11 // pred_region
          %175 = vsyncadd [#allocation3], 0
          %s177 = sshll.u32 %s0, 4
          %s178 = int_to_ptr.vmem [resolvable:$true] %s177
          %180 = dma.vmem_to_smem %s178, 16, [#allocation2], [#allocation3]
        $region16: #{tpu_custom_call.1} parent=11 // pred_fallthru
          _
      $region12: #{tpu_custom_call.1} parent=5 // pred_fallthru
        _
      %p181 = scmp.lt.s32.totalorder %s11, 2
      // Predicated region
      $region17: #{tpu_custom_call.1} parent=5 // pred_check
        %p182 = pneg %p181
      $region18: #{tpu_custom_call.1} parent=5 // pred_check_branch
        %184 = sbr.rel (%p182) target = $region20
      $region19: #{tpu_custom_call.1} parent=5 // pred_region
        // Predicated region
        $region21: #{tpu_custom_call.1} parent=19 // pred_check
          %p185 = pneg %p66
        $region22: #{tpu_custom_call.1} parent=19 // pred_check_branch
          %187 = sbr.rel (%p185) target = $region24
        $region23: #{tpu_custom_call.1} parent=19 // pred_region
          %s188 = smul.u32 2, %s19
          %p189 = scmp.lt.s32.totalorder %s18, 1
          %s190 = scalar_select %p189, %s18, 1
          %p191 = scmp.lt.s32.totalorder %s188, 1
          %s192 = scalar_select %p191, %s188, 1
          %s193 = smul.addr %s190, 8
          %s194 = sadd.s32 %s192, %s193
          %s195 = smul.addr %s194, 8
          %s196 = scalar_lea.vmem %s1, %s195
          %s197 = smul.u32 2, %s19
        $region24: #{tpu_custom_call.1} parent=19 // pred_fallthru
          _
        // Predicated region
        $region25: #{tpu_custom_call.1} parent=19 // pred_check
          %p198 = pneg %p94
        $region26: #{tpu_custom_call.1} parent=19 // pred_check_branch
          %200 = sbr.rel (%p198) target = $region28
        $region27: #{tpu_custom_call.1} parent=19 // pred_region
          %s201 = smul.u32 2, %s19
          %p202 = scmp.lt.s32.totalorder %s18, 1
          %s203 = scalar_select %p202, %s18, 1
          %p204 = scmp.lt.s32.totalorder %s201, 1
          %s205 = scalar_select %p204, %s201, 1
          %s206 = smul.addr %s203, 8
          %s207 = sadd.s32 %s205, %s206
          %s208 = smul.addr %s207, 8
          %s209 = scalar_lea.vmem %s2, %s208
          %s210 = smul.u32 2, %s19
        $region28: #{tpu_custom_call.1} parent=19 // pred_fallthru
          _
        // Predicated region
        $region29: #{tpu_custom_call.1} parent=19 // pred_check
          %p211 = pneg %p122
        $region30: #{tpu_custom_call.1} parent=19 // pred_check_branch
          %213 = sbr.rel (%p211) target = $region32
        $region31: #{tpu_custom_call.1} parent=19 // pred_region
          %s214 = smul.u32 2, %s19
          %p215 = scmp.lt.s32.totalorder %s18, 1
          %s216 = scalar_select %p215, %s18, 1
          %p217 = scmp.lt.s32.totalorder %s214, 1
          %s218 = scalar_select %p217, %s214, 1
          %s219 = smul.addr %s216, 2
          %s220 = sadd.s32 %s218, %s219
          %s221 = smul.addr %s220, 8
          %s222 = scalar_lea.vmem %s3, %s221
          %s223 = smul.u32 2, %s19
        $region32: #{tpu_custom_call.1} parent=19 // pred_fallthru
          _
      $region20: #{tpu_custom_call.1} parent=5 // pred_fallthru
        _
      %p224 = scmp.le.s32.totalorder 1, %s11
      %p225 = scmp.lt.s32.totalorder %s11, 3
      %p226 = pnand %p224, %p225
      %p227 = pneg %p226
      // Predicated region
      $region33: #{tpu_custom_call.1} parent=5 // pred_check
        _
      $region34: #{tpu_custom_call.1} parent=5 // pred_check_branch
        %229 = sbr.rel (%p226) target = $region36
      $region35: #{tpu_custom_call.1} parent=5 // pred_region
        %s230 = ssub.s32 %s11, 1
        // Predicated region
        $region37: #{tpu_custom_call.1} parent=35 // pred_check
          %p231 = pneg %p44
        $region38: #{tpu_custom_call.1} parent=35 // pred_check_branch
          %233 = sbr.rel (%p231) target = $region40
        $region39: #{tpu_custom_call.1} parent=35 // pred_region
          %235 = dma.done [#allocation3], 16
        $region40: #{tpu_custom_call.1} parent=35 // pred_fallthru
          _
        %236 = sfence
        %p237 = pneg %p44
        %p238 = pneg %p41
        %s239 = smul.u32 2, %s21
        %p240 = scmp.lt.s32.totalorder %s20, 1
        %s241 = scalar_select %p240, %s20, 1
        %p242 = scmp.lt.s32.totalorder %s239, 1
        %s243 = scalar_select %p242, %s239, 1
        %s244 = smul.addr %s241, 8
        %s245 = sadd.s32 %s243, %s244
        %s246 = smul.addr %s245, 8
        %s247 = scalar_lea.vmem %s1, %s246
        %p248 = pneg %p72
        %p249 = pneg %p69
        %s250 = smul.u32 2, %s21
        %p251 = scmp.lt.s32.totalorder %s20, 1
        %s252 = scalar_select %p251, %s20, 1
        %p253 = scmp.lt.s32.totalorder %s250, 1
        %s254 = scalar_select %p253, %s250, 1
        %s255 = smul.addr %s252, 8
        %s256 = sadd.s32 %s254, %s255
        %s257 = smul.addr %s256, 8
        %s258 = scalar_lea.vmem %s2, %s257
        %p259 = pneg %p100
        %p260 = pneg %p97
        %s261 = smul.u32 2, %s21
        %p262 = scmp.lt.s32.totalorder %s20, 1
        %s263 = scalar_select %p262, %s20, 1
        %p264 = scmp.lt.s32.totalorder %s261, 1
        %s265 = scalar_select %p264, %s261, 1
        %s266 = smul.addr %s263, 2
        %s267 = sadd.s32 %s265, %s266
        %s268 = smul.addr %s267, 8
        %s269 = scalar_lea.vmem %s3, %s268
        %p270 = pneg %p128
        %p271 = pneg %p125
        %p272 = pneg %p156
        %p273 = pneg %p153
        %s274 = smul.u32 2, %s21
        %p275 = scmp.lt.s32.totalorder %s20, 1
        %s276 = scalar_select %p275, %s20, 1
        %p277 = scmp.lt.s32.totalorder %s274, 1
        %s278 = scalar_select %p277, %s274, 1
        %s279 = smul.addr %s276, 8
        %s280 = sadd.s32 %s278, %s279
        %s281 = smul.addr %s280, 8
        %s282 = scalar_lea.vmem %s4, %s281
        %s283 = smul.u32 2, %s21
        %p284 = scmp.lt.s32.totalorder %s20, 1
        %s285 = scalar_select %p284, %s20, 1
        %p286 = scmp.lt.s32.totalorder %s283, 1
        %s287 = scalar_select %p286, %s283, 1
        %s288 = smul.addr %s285, 8
        %s289 = sadd.s32 %s287, %s288
        %s290 = smul.addr %s289, 8
        %s291 = scalar_lea.vmem %s1, %s290
        %s292 = smul.u32 2, %s21
        %s293 = smul.u32 2, %s21
        %p294 = scmp.lt.s32.totalorder %s20, 1
        %s295 = scalar_select %p294, %s20, 1
        %p296 = scmp.lt.s32.totalorder %s293, 1
        %s297 = scalar_select %p296, %s293, 1
        %s298 = smul.addr %s295, 8
        %s299 = sadd.s32 %s297, %s298
        %s300 = smul.addr %s299, 8
        %s301 = scalar_lea.vmem %s2, %s300
        %s302 = smul.u32 2, %s21
        %s303 = smul.u32 2, %s21
        %p304 = scmp.lt.s32.totalorder %s20, 1
        %s305 = scalar_select %p304, %s20, 1
        %p306 = scmp.lt.s32.totalorder %s303, 1
        %s307 = scalar_select %p306, %s303, 1
        %s308 = smul.addr %s305, 2
        %s309 = sadd.s32 %s307, %s308
        %s310 = smul.addr %s309, 8
        %s311 = scalar_lea.vmem %s3, %s310
        %s312 = smul.u32 2, %s21
        %s313 = smul.u32 2, %s21
        %p314 = scmp.lt.s32.totalorder %s20, 1
        %s315 = scalar_select %p314, %s20, 1
        %p316 = scmp.lt.s32.totalorder %s313, 1
        %s317 = scalar_select %p316, %s313, 1
        %s318 = smul.addr %s315, 8
        %s319 = sadd.s32 %s317, %s318
        %s320 = smul.addr %s319, 8
        %s321 = scalar_lea.vmem %s4, %s320
        %s322 = smul.u32 2, %s21
        %v323 = vld [vmem:[%s311] sm:$0xff]
        %v324 = vld [vmem:[%s311 + $0x8] sm:$0xf]
        %v325 = vld [vmem:[%s291] sm:$0xff]
        %v326 = vld [vmem:[%s291 + $0x8] sm:$0xf]
        %v327 = vld [vmem:[%s301] sm:$0xff]
        %v328 = vld [vmem:[%s301 + $0x8] sm:$0xf]
        %s329 = smul.u32 %s20, 4
        %s330 = sld [smem:[#allocation2 + %s329]]
        %v331 = vstv %s330
        %v332 = vsub.f32 %v327, %v331
        %v333 = vsub.f32 %v328, %v331
        %v334 = vmul.f32 %v323, %v332
        %v335 = vmul.f32 %v324, %v333
        %v336 = vadd.f32 %v331, %v334
        %v337 = vadd.f32 %v331, %v335
        %v338 = vsub.f32 %v325, %v336
        %v339 = vsub.f32 %v326, %v337
        %v340 = vand.u32 2147483647, %v338
        %v341 = vand.u32 2147483647, %v339
        %vm342 = vcmask 80896
        %343 = vst.msk [vmem:[%s321] sm:$0xff] %vm342, %v340
        %vm344 = vcmask 76800
        %345 = vst.msk [vmem:[%s321 + $0x8] sm:$0xf] %vm344, %v341
        %s346 = scalar_lea.vmem %s291, 16
        %v347 = vld [vmem:[%s346] sm:$0xff]
        %v348 = vld [vmem:[%s346 + $0x8] sm:$0xf]
        %s349 = scalar_lea.vmem %s301, 16
        %v350 = vld [vmem:[%s349] sm:$0xff]
        %v351 = vld [vmem:[%s349 + $0x8] sm:$0xf]
        %s352 = sadd.s32 %s329, 1
        %s353 = sld [smem:[#allocation2 + %s352]]
        %v354 = vstv %s353
        %v355 = vsub.f32 %v350, %v354
        %v356 = vsub.f32 %v351, %v354
        %v357 = vmul.f32 %v323, %v355
        %v358 = vmul.f32 %v324, %v356
        %v359 = vadd.f32 %v354, %v357
        %v360 = vadd.f32 %v354, %v358
        %v361 = vsub.f32 %v347, %v359
        %v362 = vsub.f32 %v348, %v360
        %v363 = vand.u32 2147483647, %v361
        %v364 = vand.u32 2147483647, %v362
        %s365 = scalar_lea.vmem %s321, 16
        %366 = vst.msk [vmem:[%s365] sm:$0xff] %vm342, %v363
        %367 = vst.msk [vmem:[%s365 + $0x8] sm:$0xf] %vm344, %v364
        %s368 = scalar_lea.vmem %s291, 32
        %v369 = vld [vmem:[%s368] sm:$0xff]
        %v370 = vld [vmem:[%s368 + $0x8] sm:$0xf]
        %s371 = scalar_lea.vmem %s301, 32
        %v372 = vld [vmem:[%s371] sm:$0xff]
        %v373 = vld [vmem:[%s371 + $0x8] sm:$0xf]
        %s374 = sadd.s32 %s329, 2
        %s375 = sld [smem:[#allocation2 + %s374]]
        %v376 = vstv %s375
        %v377 = vsub.f32 %v372, %v376
        %v378 = vsub.f32 %v373, %v376
        %v379 = vmul.f32 %v323, %v377
        %v380 = vmul.f32 %v324, %v378
        %v381 = vadd.f32 %v376, %v379
        %v382 = vadd.f32 %v376, %v380
        %v383 = vsub.f32 %v369, %v381
        %v384 = vsub.f32 %v370, %v382
        %v385 = vand.u32 2147483647, %v383
        %v386 = vand.u32 2147483647, %v384
        %s387 = scalar_lea.vmem %s321, 32
        %388 = vst.msk [vmem:[%s387] sm:$0xff] %vm342, %v385
        %389 = vst.msk [vmem:[%s387 + $0x8] sm:$0xf] %vm344, %v386
        %s390 = scalar_lea.vmem %s291, 48
        %v391 = vld [vmem:[%s390] sm:$0xff]
        %v392 = vld [vmem:[%s390 + $0x8] sm:$0xf]
        %s393 = scalar_lea.vmem %s301, 48
        %v394 = vld [vmem:[%s393] sm:$0xff]
        %v395 = vld [vmem:[%s393 + $0x8] sm:$0xf]
        %s396 = sadd.s32 %s329, 3
        %s397 = sld [smem:[#allocation2 + %s396]]
        %v398 = vstv %s397
        %v399 = vsub.f32 %v394, %v398
        %v400 = vsub.f32 %v395, %v398
        %v401 = vmul.f32 %v323, %v399
        %v402 = vmul.f32 %v324, %v400
        %v403 = vadd.f32 %v398, %v401
        %v404 = vadd.f32 %v398, %v402
        %v405 = vsub.f32 %v391, %v403
        %v406 = vsub.f32 %v392, %v404
        %v407 = vand.u32 2147483647, %v405
        %v408 = vand.u32 2147483647, %v406
        %s409 = scalar_lea.vmem %s321, 48
        %410 = vst.msk [vmem:[%s409] sm:$0xff] %vm342, %v407
        %411 = vst.msk [vmem:[%s409 + $0x8] sm:$0xf] %vm344, %v408
        %s412 = smul.u32 2, %s21
        %p413 = scmp.lt.s32.totalorder %s20, 1
        %s414 = scalar_select %p413, %s20, 1
        %p415 = scmp.lt.s32.totalorder %s412, 1
        %s416 = scalar_select %p415, %s412, 1
        %s417 = smul.addr %s414, 8
        %s418 = sadd.s32 %s416, %s417
        %s419 = smul.addr %s418, 8
        %s420 = scalar_lea.vmem %s4, %s419
        // Predicated region
        $region41: #{tpu_custom_call.1} parent=35 // pred_check
          %p421 = pneg %p153
        $region42: #{tpu_custom_call.1} parent=35 // pred_check_branch
          %423 = sbr.rel (%p421) target = $region44
        $region43: #{tpu_custom_call.1} parent=35 // pred_region
          %s424 = smul.u32 2, %s21
        $region44: #{tpu_custom_call.1} parent=35 // pred_fallthru
          _
      $region36: #{tpu_custom_call.1} parent=5 // pred_fallthru
        _
      %p425 = scmp.le.s32.totalorder 2, %s11
      // Predicated region
      $region45: #{tpu_custom_call.1} parent=5 // pred_check
        %p426 = pneg %p425
      $region46: #{tpu_custom_call.1} parent=5 // pred_check_branch
        %428 = sbr.rel (%p426) target = $region48
      $region47: #{tpu_custom_call.1} parent=5 // pred_region
        %s429 = ssub.s32 %s11, 2
        // Predicated region
        $region49: #{tpu_custom_call.1} parent=47 // pred_check
          %p430 = pneg %p159
        $region50: #{tpu_custom_call.1} parent=47 // pred_check_branch
          %432 = sbr.rel (%p430) target = $region52
        $region51: #{tpu_custom_call.1} parent=47 // pred_region
          %s433 = smul.u32 2, %s23
          %p434 = scmp.lt.s32.totalorder %s22, 1
          %s435 = scalar_select %p434, %s22, 1
          %p436 = scmp.lt.s32.totalorder %s433, 1
          %s437 = scalar_select %p436, %s433, 1
          %s438 = smul.addr %s435, 8
          %s439 = sadd.s32 %s437, %s438
          %s440 = smul.addr %s439, 8
          %s441 = scalar_lea.vmem %s4, %s440
        $region52: #{tpu_custom_call.1} parent=47 // pred_fallthru
          _
      $region48: #{tpu_custom_call.1} parent=5 // pred_fallthru
        _
    $region6: #{tpu_custom_call.1} parent=1 // loop_footer
      %s15 = sadd.s32 1, %s11
    $region7: #{tpu_custom_call.1} parent=1 // loop_footer_branch
      %10 = sbr.rel target = $region3
    $region8: #{tpu_custom_call.1} parent=1 // loop_exit
      _
    %442 = vsyncpa [#allocation3], 1
    %s443 = scalar_lea.sflag [#allocation3], 1
    %444 = vsyncpa %s443, 1

</llo_original>
